<compile_context>
chip_gen: v5e
topology: v5e:2x2
jax: 0.10.0
libtpu: 0.0.40
codegen_flags: <defaults>
</compile_context>

<pallas_src>
import functools

import jax
import jax.numpy as jnp
from jax.experimental import pallas as pl
from jax.experimental.pallas import tpu as pltpu

C = 50
D_IN = 99 + C      # 149
N_SEQ = 32         # implied by reshape(-1, 32, 64, 3): 32 * 192 == 2048 * 3
H1 = 96
H2 = 192
D_GSP = 3


def finalgen_kernel(x_ref, gspt_ref, a_ref, w1_ref, b1_ref, w2_ref, b2_ref, o_ref):
    bt = x_ref.shape[0]
    x = x_ref[...]                                        # (bt, 32, 149) bf16
    xf = x.reshape(bt * N_SEQ, D_IN)                      # flat rows for the linears

    # attention scores: s = (x @ (Wq Wk^T)) @ x^T  ==  q @ k^T
    t = jnp.dot(xf, a_ref[...], preferred_element_type=jnp.float32)      # (bt*32, 149) f32
    t = t.astype(jnp.bfloat16).reshape(bt, N_SEQ, D_IN)
    s = jnp.einsum("bqd,bkd->bqk", t, x,
                   preferred_element_type=jnp.float32)                   # (bt, 32, 32) f32

    # softmax in f32; 1/l folded in after p @ x via approx reciprocal (EUP)
    s = s - jnp.max(s, axis=-1, keepdims=True)
    e = jnp.exp(s)
    l = jnp.sum(e, axis=-1, keepdims=True)                               # (bt, 32, 1)
    p = e.astype(jnp.bfloat16)

    # m = softmax(q k^T) @ x    (torch attends over x; vm(x) is dead code)
    ctx = jnp.einsum("bqk,bkd->bqd", p, x,
                     preferred_element_type=jnp.float32)                 # (bt, 32, 149)
    ctx = ctx * pl.reciprocal(l, approx=True)
    ctx = ctx.astype(jnp.bfloat16).reshape(bt * N_SEQ, D_IN)

    # mlp: Linear(149,96) -> LeakyReLU(0.2) -> Linear(96,192)   (biases in f32)
    h = jnp.dot(ctx, w1_ref[...], preferred_element_type=jnp.float32) + b1_ref[...]
    h = jnp.where(h > 0, h, 0.2 * h)
    y = jnp.dot(h.astype(jnp.bfloat16), w2_ref[...],
                preferred_element_type=jnp.float32) + b2_ref[...]        # (bt*32, 192)

    # reshape(-1,32,64,3) + GSP[...,None,:]  ==  add GSP pre-tiled 64x along the lane axis
    o_ref[...] = (y.reshape(bt, N_SEQ, H2) + gspt_ref[...]).astype(o_ref.dtype)


def init_params(key):
    ks = jax.random.split(key, 6)
    scale = 0.05
    return {
        # stored as (in, out)
        "wq": scale * jax.random.normal(ks[0], (D_IN, D_IN), jnp.float32),
        "wk": scale * jax.random.normal(ks[1], (D_IN, D_IN), jnp.float32),
        "w1": scale * jax.random.normal(ks[2], (D_IN, H1), jnp.float32),
        "b1": scale * jax.random.normal(ks[3], (1, H1), jnp.float32),
        "w2": scale * jax.random.normal(ks[4], (H1, H2), jnp.float32),
        "b2": scale * jax.random.normal(ks[5], (1, H2), jnp.float32),
    }


@functools.partial(jax.jit, static_argnames=("b_tile",))
def finalgen_forward(params, z_, gss, gsp, *, b_tile=32):
    x = jnp.concatenate([z_, gss, gsp], axis=-1)          # (B, 32, 149) f32
    B = x.shape[0]
    assert x.shape == (B, N_SEQ, D_IN)

    bt = min(b_tile, B)                                   # batch elements per grid step
    n_blocks = pl.cdiv(B, bt)
    b_pad = n_blocks * bt

    # Pre-tile GSP to a lane-dense (B, 32, 192) f32 slab (replication done once by XLA).
    gsp_t = jnp.tile(gsp, (1, 1, H2 // D_GSP)).astype(jnp.float32)
    x_bf = x.astype(jnp.bfloat16)
    if b_pad != B:
        pad = ((0, b_pad - B), (0, 0), (0, 0))
        x_bf = jnp.pad(x_bf, pad)
        gsp_t = jnp.pad(gsp_t, pad)

    # Fold Wq Wk^T into one score weight (f32 product, bf16 MXU operand).
    a = (params["wq"] @ params["wk"].T).astype(jnp.bfloat16)
    w1 = params["w1"].astype(jnp.bfloat16)
    w2 = params["w2"].astype(jnp.bfloat16)
    b1 = params["b1"].astype(jnp.float32)
    b2 = params["b2"].astype(jnp.float32)

    out = pl.pallas_call(
        finalgen_kernel,
        out_shape=jax.ShapeDtypeStruct((b_pad, N_SEQ, H2), jnp.float32),
        grid_spec=pltpu.PrefetchScalarGridSpec(
            num_scalar_prefetch=0,
            grid=(n_blocks,),
            in_specs=[
                pl.BlockSpec((bt, N_SEQ, D_IN), lambda i: (i, 0, 0)),   # x (bf16)
                pl.BlockSpec((bt, N_SEQ, H2), lambda i: (i, 0, 0)),     # gsp pre-tiled (f32)
                pl.BlockSpec((D_IN, D_IN), lambda i: (0, 0)),           # A = Wq Wk^T
                pl.BlockSpec((D_IN, H1), lambda i: (0, 0)),             # w1
                pl.BlockSpec((1, H1), lambda i: (0, 0)),                # b1
                pl.BlockSpec((H1, H2), lambda i: (0, 0)),               # w2
                pl.BlockSpec((1, H2), lambda i: (0, 0)),                # b2
            ],
            out_specs=pl.BlockSpec((bt, N_SEQ, H2), lambda i: (i, 0, 0)),
        ),
        compiler_params=pltpu.CompilerParams(
            dimension_semantics=("parallel",),
        ),
    )(x_bf, gsp_t, a, w1, b1, w2, b2)

    pts = out[:B].reshape(-1, 2048, 3)
    # TODO(synk): `ss` is undefined (NameError) in the original torch forward; the most
    # plausible intent is repeat_interleave over GSS, which is what we return here.
    rep = jnp.repeat(gss, 64, axis=1)
    return rep, pts


def finalgen_ref_f32(params, z_, gss, gsp):
    """Pure-f32 JAX reference mirroring the torch forward (output-relevant parts)."""
    x = jnp.concatenate([z_, gss, gsp], axis=-1)
    q = x @ params["wq"]
    k = x @ params["wk"]
    s = jnp.sum(q[:, :, None, :] * k[:, None, :, :], -1)
    p = jax.nn.softmax(s, axis=-1)
    m = p @ x
    h = m @ params["w1"] + params["b1"]
    h = jnp.where(h > 0, h, 0.2 * h)
    y = h @ params["w2"] + params["b2"]
    y = y.reshape(-1, N_SEQ, H2 // D_GSP, D_GSP) + gsp[..., None, :]
    return jnp.repeat(gss, 64, axis=1), y.reshape(-1, 2048, 3)


def finalgen_ref_bf16(params, z_, gss, gsp):
    """Reference mirroring the kernel's numerics (bf16 MXU operands, f32 accumulation)."""
    f32 = jnp.float32
    bf = lambda v: v.astype(jnp.bfloat16)
    x = bf(jnp.concatenate([z_, gss, gsp], axis=-1))
    a = bf(params["wq"] @ params["wk"].T)
    t = bf(jnp.einsum("bnd,de->bne", x, a, preferred_element_type=f32))
    s = jnp.einsum("bqd,bkd->bqk", t, x, preferred_element_type=f32)
    s = s - jnp.max(s, -1, keepdims=True)
    e = jnp.exp(s)
    ctx = jnp.einsum("bqk,bkd->bqd", bf(e), x, preferred_element_type=f32)
    ctx = bf(ctx / jnp.sum(e, -1, keepdims=True))
    h = jnp.einsum("bnd,dh->bnh", ctx, bf(params["w1"]),
                   preferred_element_type=f32) + params["b1"]
    h = jnp.where(h > 0, h, 0.2 * h)
    y = jnp.einsum("bnh,ho->bno", bf(h), bf(params["w2"]),
                   preferred_element_type=f32) + params["b2"]
    y = y + jnp.tile(gsp, (1, 1, H2 // D_GSP))
    return y.reshape(-1, 2048, 3)


if __name__ == "__main__":
    B = 2
    key = jax.random.PRNGKey(0)
    kp, kz, ks, kg = jax.random.split(key, 4)
    params = init_params(kp)

    # z_ (B,32,96) + GSS (B,32,50) + GSP (B,32,3) concat to (B,32,149)
    z_ = jax.random.normal(kz, (B, N_SEQ, 96), jnp.float32)
    gss = jax.random.normal(ks, (B, N_SEQ, C), jnp.float32)
    gsp = jax.random.normal(kg, (B, N_SEQ, D_GSP), jnp.float32)

    rep, pts = finalgen_forward(params, z_, gss, gsp)
    jax.block_until_ready(pts)

    assert pts.shape == (B, 2048, 3)
    assert rep.shape == (B, 2048, C)

    # Tight check vs. a reference with the same bf16-operand matmuls (kernel-bug detector).
    pts_bf = finalgen_ref_bf16(params, z_, gss, gsp)
    err_tight = float(jnp.max(jnp.abs(pts - pts_bf)))
    assert err_tight < 5e-3, err_tight

    # Semantic sanity check vs. the faithful all-f32 torch-mirror reference
    # (looser bound purely accounts for the bf16 MXU operands).
    rep_r, pts_r = finalgen_ref_f32(params, z_, gss, gsp)
    err_loose = float(jnp.max(jnp.abs(pts - pts_r)))
    assert err_loose < 1e-1, err_loose
    assert float(jnp.max(jnp.abs(rep - rep_r))) < 1e-6

    print("KERNEL_OK")
</pallas_src>

<mosaic_0001>
module attributes {stable_mosaic.version = 11 : i64} {
  func.func @finalgen_kernel(%arg0: i32, %arg1: memref<2x32x149xbf16, #tpu.memory_space<vmem>>, %arg2: memref<2x32x192xf32, #tpu.memory_space<vmem>>, %arg3: memref<149x149xbf16, #tpu.memory_space<vmem>>, %arg4: memref<149x96xbf16, #tpu.memory_space<vmem>>, %arg5: memref<1x96xf32, #tpu.memory_space<vmem>>, %arg6: memref<96x192xbf16, #tpu.memory_space<vmem>>, %arg7: memref<1x192xf32, #tpu.memory_space<vmem>>, %arg8: memref<2x32x192xf32, #tpu.memory_space<vmem>>) attributes {dimension_semantics = [#tpu.dimension_semantics<parallel>], iteration_bounds = array<i64: 1>, scalar_prefetch = 0 : i64, scratch_operands = 0 : i64, tpu.core_type = #tpu.core_type<tc>, window_params = [{transform_indices = @transform_0, window_bounds = array<i64: 2, 32, 149>}, {transform_indices = @transform_1, window_bounds = array<i64: 2, 32, 192>}, {pipeline_mode = #tpu.pipeline_mode<synchronous>, transform_indices = @transform_2, window_bounds = array<i64: 149, 149>}, {pipeline_mode = #tpu.pipeline_mode<synchronous>, transform_indices = @transform_3, window_bounds = array<i64: 149, 96>}, {pipeline_mode = #tpu.pipeline_mode<synchronous>, transform_indices = @transform_4, window_bounds = array<i64: 1, 96>}, {pipeline_mode = #tpu.pipeline_mode<synchronous>, transform_indices = @transform_5, window_bounds = array<i64: 96, 192>}, {pipeline_mode = #tpu.pipeline_mode<synchronous>, transform_indices = @transform_6, window_bounds = array<i64: 1, 192>}, {transform_indices = @transform_7, window_bounds = array<i64: 2, 32, 192>}]} {
    %c0 = arith.constant 0 : index
    %c0_0 = arith.constant 0 : index
    %c0_1 = arith.constant 0 : index
    %0 = vector.load %arg1[%c0, %c0_0, %c0_1] : memref<2x32x149xbf16, #tpu.memory_space<vmem>>, vector<2x32x149xbf16>
    %1 = vector.shape_cast %0 : vector<2x32x149xbf16> to vector<64x149xbf16>
    %c0_2 = arith.constant 0 : index
    %c0_3 = arith.constant 0 : index
    %2 = vector.load %arg3[%c0_2, %c0_3] : memref<149x149xbf16, #tpu.memory_space<vmem>>, vector<149x149xbf16>
    %cst = arith.constant dense<0.000000e+00> : vector<64x149xf32>
    %3 = tpu.matmul %1, %2, %cst {dimension_numbers = #tpu.dot_dimension_numbers<[1], [0], [0], [1], [0, 0, 1, 1], [], []>} : vector<64x149xbf16>, vector<149x149xbf16>, vector<64x149xf32> -> vector<64x149xf32>
    %4 = arith.truncf %3 : vector<64x149xf32> to vector<64x149xbf16>
    %5 = vector.shape_cast %4 : vector<64x149xbf16> to vector<2x32x149xbf16>
    "tpu.trace_start"() <{level = 10 : i32, message = "bqd,bkd->bqk"}> : () -> ()
    %cst_4 = arith.constant dense<0.000000e+00> : vector<2x32x32xf32>
    %6 = tpu.matmul %5, %0, %cst_4 {dimension_numbers = #tpu.dot_dimension_numbers<[2], [2], [1], [1], [0, 0, 0, 1, 1, 1], [0], [0]>} : vector<2x32x149xbf16>, vector<2x32x149xbf16>, vector<2x32x32xf32> -> vector<2x32x32xf32>
    "tpu.trace_stop"() : () -> ()
    %cst_5 = arith.constant dense<0xFF800000> : vector<2x32xf32>
    %7 = vector.multi_reduction <maximumf>, %6, %cst_5 [2] : vector<2x32x32xf32> to vector<2x32xf32>
    %8 = vector.shape_cast %7 : vector<2x32xf32> to vector<2x32x1xf32>
    %9 = vector.broadcast %8 : vector<2x32x1xf32> to vector<2x32x32xf32>
    %10 = arith.subf %6, %9 : vector<2x32x32xf32>
    %11 = math.exp %10 : vector<2x32x32xf32>
    %cst_6 = arith.constant dense<0.000000e+00> : vector<2x32xf32>
    %12 = vector.multi_reduction <add>, %11, %cst_6 [2] : vector<2x32x32xf32> to vector<2x32xf32>
    %13 = vector.shape_cast %12 : vector<2x32xf32> to vector<2x32x1xf32>
    %14 = arith.truncf %11 : vector<2x32x32xf32> to vector<2x32x32xbf16>
    "tpu.trace_start"() <{level = 10 : i32, message = "bqk,bkd->bqd"}> : () -> ()
    %cst_7 = arith.constant dense<0.000000e+00> : vector<2x32x149xf32>
    %15 = tpu.matmul %14, %0, %cst_7 {dimension_numbers = #tpu.dot_dimension_numbers<[2], [1], [1], [2], [0, 0, 0, 1, 1, 2], [0], [0]>} : vector<2x32x32xbf16>, vector<2x32x149xbf16>, vector<2x32x149xf32> -> vector<2x32x149xf32>
    "tpu.trace_stop"() : () -> ()
    %16 = tpu.reciprocal %13 {approx = true} : vector<2x32x1xf32> -> vector<2x32x1xf32>
    %17 = vector.broadcast %16 : vector<2x32x1xf32> to vector<2x32x149xf32>
    %18 = arith.mulf %15, %17 : vector<2x32x149xf32>
    %19 = arith.truncf %18 : vector<2x32x149xf32> to vector<2x32x149xbf16>
    %20 = vector.shape_cast %19 : vector<2x32x149xbf16> to vector<64x149xbf16>
    %c0_8 = arith.constant 0 : index
    %c0_9 = arith.constant 0 : index
    %21 = vector.load %arg4[%c0_8, %c0_9] : memref<149x96xbf16, #tpu.memory_space<vmem>>, vector<149x96xbf16>
    %cst_10 = arith.constant dense<0.000000e+00> : vector<64x96xf32>
    %22 = tpu.matmul %20, %21, %cst_10 {dimension_numbers = #tpu.dot_dimension_numbers<[1], [0], [0], [1], [0, 0, 1, 1], [], []>} : vector<64x149xbf16>, vector<149x96xbf16>, vector<64x96xf32> -> vector<64x96xf32>
    %c0_11 = arith.constant 0 : index
    %c0_12 = arith.constant 0 : index
    %23 = vector.load %arg5[%c0_11, %c0_12] : memref<1x96xf32, #tpu.memory_space<vmem>>, vector<1x96xf32>
    %24 = vector.broadcast %23 : vector<1x96xf32> to vector<64x96xf32>
    %25 = arith.addf %22, %24 : vector<64x96xf32>
    %cst_13 = arith.constant 0.000000e+00 : f32
    %26 = vector.broadcast %cst_13 : f32 to vector<64x96xf32>
    %27 = arith.cmpf ogt, %25, %26 : vector<64x96xf32>
    %cst_14 = arith.constant 2.000000e-01 : f32
    %28 = vector.broadcast %cst_14 : f32 to vector<64x96xf32>
    %29 = arith.mulf %28, %25 : vector<64x96xf32>
    %30 = arith.select %27, %25, %29 : vector<64x96xi1>, vector<64x96xf32>
    %31 = arith.truncf %30 : vector<64x96xf32> to vector<64x96xbf16>
    %c0_15 = arith.constant 0 : index
    %c0_16 = arith.constant 0 : index
    %32 = vector.load %arg6[%c0_15, %c0_16] : memref<96x192xbf16, #tpu.memory_space<vmem>>, vector<96x192xbf16>
    %cst_17 = arith.constant dense<0.000000e+00> : vector<64x192xf32>
    %33 = tpu.matmul %31, %32, %cst_17 {dimension_numbers = #tpu.dot_dimension_numbers<[1], [0], [0], [1], [0, 0, 1, 1], [], []>} : vector<64x96xbf16>, vector<96x192xbf16>, vector<64x192xf32> -> vector<64x192xf32>
    %c0_18 = arith.constant 0 : index
    %c0_19 = arith.constant 0 : index
    %34 = vector.load %arg7[%c0_18, %c0_19] : memref<1x192xf32, #tpu.memory_space<vmem>>, vector<1x192xf32>
    %35 = vector.broadcast %34 : vector<1x192xf32> to vector<64x192xf32>
    %36 = arith.addf %33, %35 : vector<64x192xf32>
    %37 = vector.shape_cast %36 : vector<64x192xf32> to vector<2x32x192xf32>
    %c0_20 = arith.constant 0 : index
    %c0_21 = arith.constant 0 : index
    %c0_22 = arith.constant 0 : index
    %38 = vector.load %arg2[%c0_20, %c0_21, %c0_22] : memref<2x32x192xf32, #tpu.memory_space<vmem>>, vector<2x32x192xf32>
    %39 = arith.addf %37, %38 : vector<2x32x192xf32>
    %c0_23 = arith.constant 0 : index
    %c0_24 = arith.constant 0 : index
    %c0_25 = arith.constant 0 : index
    %40 = vector.load %arg8[%c0_23, %c0_24, %c0_25] : memref<2x32x192xf32, #tpu.memory_space<vmem>>, vector<2x32x192xf32>
    tpu.vector_store %arg8[%c0_23, %c0_24, %c0_25], %39 {strides = array<i32>} : memref<2x32x192xf32, #tpu.memory_space<vmem>>, vector<2x32x192xf32>,
    return
  }
  func.func @transform_0(%arg0: i32) -> (i32, i32, i32) {
    %c0_i32 = arith.constant 0 : i32
    %c0_i32_0 = arith.constant 0 : i32
    %c0_i32_1 = arith.constant 0 : i32
    return %arg0, %c0_i32, %c0_i32_0 : i32, i32, i32
  }
  func.func @transform_1(%arg0: i32) -> (i32, i32, i32) {
    %c0_i32 = arith.constant 0 : i32
    %c0_i32_0 = arith.constant 0 : i32
    %c0_i32_1 = arith.constant 0 : i32
    return %arg0, %c0_i32, %c0_i32_0 : i32, i32, i32
  }
  func.func @transform_2(%arg0: i32) -> (i32, i32) {
    %c0_i32 = arith.constant 0 : i32
    %c0_i32_0 = arith.constant 0 : i32
    %c0_i32_1 = arith.constant 0 : i32
    return %c0_i32, %c0_i32_0 : i32, i32
  }
  func.func @transform_3(%arg0: i32) -> (i32, i32) {
    %c0_i32 = arith.constant 0 : i32
    %c0_i32_0 = arith.constant 0 : i32
    %c0_i32_1 = arith.constant 0 : i32
    return %c0_i32, %c0_i32_0 : i32, i32
  }
  func.func @transform_4(%arg0: i32) -> (i32, i32) {
    %c0_i32 = arith.constant 0 : i32
    %c0_i32_0 = arith.constant 0 : i32
    %c0_i32_1 = arith.constant 0 : i32
    return %c0_i32, %c0_i32_0 : i32, i32
  }
  func.func @transform_5(%arg0: i32) -> (i32, i32) {
    %c0_i32 = arith.constant 0 : i32
    %c0_i32_0 = arith.constant 0 : i32
    %c0_i32_1 = arith.constant 0 : i32
    return %c0_i32, %c0_i32_0 : i32, i32
  }
  func.func @transform_6(%arg0: i32) -> (i32, i32) {
    %c0_i32 = arith.constant 0 : i32
    %c0_i32_0 = arith.constant 0 : i32
    %c0_i32_1 = arith.constant 0 : i32
    return %c0_i32, %c0_i32_0 : i32, i32
  }
  func.func @transform_7(%arg0: i32) -> (i32, i32, i32) {
    %c0_i32 = arith.constant 0 : i32
    %c0_i32_0 = arith.constant 0 : i32
    %c0_i32_1 = arith.constant 0 : i32
    return %arg0, %c0_i32, %c0_i32_0 : i32, i32, i32
  }
}

</mosaic_0001>

<llo_original>
// kernel: finalgen_forward.1
$region0: #{finalgen_forward.1}
  #allocation0 [shape = 'u32[]', space=smem, size = 0x4, offset = 0x4, fixed_abs, tag = 'smem constant byte address 0x4 - core index']
  #allocation1 [shape = 'u32[72,128]{1,0:T(1,128)}', space=vmem, size = 0x9000, scoped, tag = 'internal scratch']
  %s0 = inlined_call_operand.vmem [shape: bf16[2,32,149], index: 0, kind: input, shape index: {}]
  %s1 = inlined_call_operand.vmem [shape: f32[2,32,192], index: 1, kind: input, shape index: {}]
  %s2 = inlined_call_operand.vmem [shape: bf16[149,149], index: 2, kind: input, shape index: {}]
  %s3 = inlined_call_operand.vmem [shape: bf16[149,96], index: 3, kind: input, shape index: {}]
  %s4 = inlined_call_operand.hbm [shape: f32[1,96], index: 4, kind: input, shape index: {}]
  %s5 = inlined_call_operand.vmem [shape: bf16[96,192], index: 5, kind: input, shape index: {}]
  %s6 = inlined_call_operand.hbm [shape: f32[1,192], index: 6, kind: input, shape index: {}]
  %s7 = inlined_call_operand.vmem [shape: f32[2,32,192], index: 7, kind: output, shape index: {}]
  %s8 = sld [smem:[#allocation0]]
  $region46: #{finalgen_forward.1} parent=0
    _
  %s10 = ssub.s32 1, %s8
  %s11 = scalar_select 0, %s10, %s8
  $region1: #{finalgen_forward.1} parent=0
    #allocation2 [shape = 'u8[512]{0}', space=vmem, size = 0x400, scoped, tag = 'input window, operand 4, single buffered']
    #allocation3 [shape = 's32[1]{0}', space=sflag, size = 0x4, scoped, tag = 'scoped memory for finalgen_forward.1']
    #allocation4 [shape = 'u8[1024]{0}', space=vmem, size = 0x400, scoped, tag = 'input window, operand 6, single buffered']
    #allocation5 [shape = 's32[1]{0}', space=sflag, size = 0x4, scoped, tag = 'scoped memory for finalgen_forward.1']
    %12 = vsyncpa [#allocation3], 0
    %13 = vsyncpa [#allocation5], 0
    // Predicated region
    $region2: #{finalgen_forward.1} parent=1 // pred_check
      _
    $region3: #{finalgen_forward.1} parent=1 // pred_check_branch
      %15 = sbr.rel (0) target = $region5
    $region4: #{finalgen_forward.1} parent=1 // pred_region
      _
    $region5: #{finalgen_forward.1} parent=1 // pred_fallthru
      _
    // Predicated region
    $region6: #{finalgen_forward.1} parent=1 // pred_check
      _
    $region7: #{finalgen_forward.1} parent=1 // pred_check_branch
      %17 = sbr.rel (0) target = $region9
    $region8: #{finalgen_forward.1} parent=1 // pred_region
      _
    $region9: #{finalgen_forward.1} parent=1 // pred_fallthru
      _
    // Predicated region
    $region10: #{finalgen_forward.1} parent=1 // pred_check
      _
    $region11: #{finalgen_forward.1} parent=1 // pred_check_branch
      %19 = sbr.rel (0) target = $region13
    $region12: #{finalgen_forward.1} parent=1 // pred_region
      _
    $region13: #{finalgen_forward.1} parent=1 // pred_fallthru
      _
    // Predicated region
    $region14: #{finalgen_forward.1} parent=1 // pred_check
      _
    $region15: #{finalgen_forward.1} parent=1 // pred_check_branch
      %21 = sbr.rel (0) target = $region17
    $region16: #{finalgen_forward.1} parent=1 // pred_region
      _
    $region17: #{finalgen_forward.1} parent=1 // pred_fallthru
      _
    // Predicated region
    $region18: #{finalgen_forward.1} parent=1 // pred_check
      _
    $region19: #{finalgen_forward.1} parent=1 // pred_check_branch
      %23 = sbr.rel (0) target = $region21
    $region20: #{finalgen_forward.1} parent=1 // pred_region
      %25 = vsyncadd [#allocation3], 0
      %s27 = sshll.u32 %s4, 4
      %s28 = int_to_ptr.hbm [resolvable:$true] %s27
      %s29 = sshll.u32 [#allocation2], 4
      %s30 = int_to_ptr.vmem [resolvable:$true] %s29
      %32 = dma.hbm_to_vmem [thread:$0]  %s28, 16, %s30, [#allocation3]
    $region21: #{finalgen_forward.1} parent=1 // pred_fallthru
      _
    // Predicated region
    $region22: #{finalgen_forward.1} parent=1 // pred_check
      _
    $region23: #{finalgen_forward.1} parent=1 // pred_check_branch
      %34 = sbr.rel (0) target = $region25
    $region24: #{finalgen_forward.1} parent=1 // pred_region
      _
    $region25: #{finalgen_forward.1} parent=1 // pred_fallthru
      _
    // Predicated region
    $region26: #{finalgen_forward.1} parent=1 // pred_check
      _
    $region27: #{finalgen_forward.1} parent=1 // pred_check_branch
      %36 = sbr.rel (0) target = $region29
    $region28: #{finalgen_forward.1} parent=1 // pred_region
      %38 = vsyncadd [#allocation5], 0
      %s40 = sshll.u32 %s6, 4
      %s41 = int_to_ptr.hbm [resolvable:$true] %s40
      %s42 = sshll.u32 [#allocation4], 4
      %s43 = int_to_ptr.vmem [resolvable:$true] %s42
      %45 = dma.hbm_to_vmem [thread:$0]  %s41, 32, %s43, [#allocation5]
    $region29: #{finalgen_forward.1} parent=1 // pred_fallthru
      _
    // Predicated region
    $region30: #{finalgen_forward.1} parent=1 // pred_check
      _
    $region31: #{finalgen_forward.1} parent=1 // pred_check_branch
      %47 = sbr.rel (0) target = $region33
    $region32: #{finalgen_forward.1} parent=1 // pred_region
      %49 = dma.done [#allocation3], 16
    $region33: #{finalgen_forward.1} parent=1 // pred_fallthru
      _
    // Predicated region
    $region34: #{finalgen_forward.1} parent=1 // pred_check
      _
    $region35: #{finalgen_forward.1} parent=1 // pred_check_branch
      %51 = sbr.rel (0) target = $region37
    $region36: #{finalgen_forward.1} parent=1 // pred_region
      %53 = dma.done [#allocation5], 32
    $region37: #{finalgen_forward.1} parent=1 // pred_fallthru
      _
    %v55 = vld [vmem:[%s0] sm:$0xff]
    %v56 = vld [vmem:[%s0 + $0x8] sm:$0xff]
    %v57 = vld [vmem:[%s0 + $0x10] sm:$0xff]
    %v58 = vld [vmem:[%s0 + $0x18] sm:$0xff]
    %v59 = vld [vmem:[%s0 + $0x20] sm:$0xff]
    %v60 = vld [vmem:[%s0 + $0x28] sm:$0xff]
    %v61 = vld [vmem:[%s0 + $0x30] sm:$0xff]
    %v62 = vld [vmem:[%s0 + $0x38] sm:$0xff]
    %v63 = vld [vmem:[%s2] sm:$0xff]
    %v64 = vld [vmem:[%s2 + $0x8] sm:$0xff]
    %v65 = vld [vmem:[%s2 + $0x10] sm:$0xff]
    %v66 = vld [vmem:[%s2 + $0x18] sm:$0xff]
    %v67 = vld [vmem:[%s2 + $0x20] sm:$0xff]
    %v68 = vld [vmem:[%s2 + $0x28] sm:$0xff]
    %v69 = vld [vmem:[%s2 + $0x30] sm:$0xff]
    %v70 = vld [vmem:[%s2 + $0x38] sm:$0xff]
    %v71 = vld [vmem:[%s2 + $0x40] sm:$0xff]
    %v72 = vld [vmem:[%s2 + $0x48] sm:$0xff]
    %v73 = vld [vmem:[%s2 + $0x50] sm:$0xff]
    %v74 = vld [vmem:[%s2 + $0x58] sm:$0xff]
    %v75 = vld [vmem:[%s2 + $0x60] sm:$0xff]
    %v76 = vld [vmem:[%s2 + $0x68] sm:$0xff]
    %v77 = vld [vmem:[%s2 + $0x70] sm:$0xff]
    %v78 = vld [vmem:[%s2 + $0x78] sm:$0xff]
    %v79 = vld [vmem:[%s2 + $0x80] sm:$0xff]
    %v80 = vld [vmem:[%s2 + $0x88] sm:$0xff]
    %v81 = vld [vmem:[%s2 + $0x90] sm:$0x77]
    %v90 = vunpack.c.l.b16 %v55
    %v91 = vunpack.c.h.b16 %v55
    %v92 = vunpack.c.l.b16 %v56
    %v93 = vunpack.c.h.b16 %v56
    %v94 = vunpack.c.l.b16 %v57
    %v95 = vunpack.c.h.b16 %v57
    %v96 = vunpack.c.l.b16 %v58
    %v97 = vunpack.c.h.b16 %v58
    %v98 = vunpack.c.l.b16 %v59
    %v99 = vunpack.c.h.b16 %v59
    %v100 = vunpack.c.l.b16 %v60
    %v101 = vunpack.c.h.b16 %v60
    %v102 = vunpack.c.l.b16 %v61
    %v103 = vunpack.c.h.b16 %v61
    %v104 = vunpack.c.l.b16 %v62
    %v105 = vunpack.c.h.b16 %v62
    %v106 = vpack.c.b16 %v92, %v90
    %v107 = vpack.c.b16 %v93, %v91
    %v108 = vpack.c.b16 %v96, %v94
    %v109 = vpack.c.b16 %v97, %v95
    %v110 = vpack.c.b16 %v100, %v98
    %v111 = vpack.c.b16 %v101, %v99
    %v112 = vpack.c.b16 %v104, %v102
    %v113 = vpack.c.b16 %v105, %v103
    %v137 = vunpack.c.l.b16 %v63
    %v138 = vunpack.c.h.b16 %v63
    %v139 = vunpack.c.l.b16 %v64
    %v140 = vunpack.c.h.b16 %v64
    %v141 = vunpack.c.l.b16 %v65
    %v142 = vunpack.c.h.b16 %v65
    %v143 = vunpack.c.l.b16 %v66
    %v144 = vunpack.c.h.b16 %v66
    %v145 = vunpack.c.l.b16 %v67
    %v146 = vunpack.c.h.b16 %v67
    %v147 = vunpack.c.l.b16 %v68
    %v148 = vunpack.c.h.b16 %v68
    %v149 = vunpack.c.l.b16 %v69
    %v150 = vunpack.c.h.b16 %v69
    %v151 = vunpack.c.l.b16 %v70
    %v152 = vunpack.c.h.b16 %v70
    %v153 = vunpack.c.l.b16 %v71
    %v154 = vunpack.c.h.b16 %v71
    %v155 = vunpack.c.l.b16 %v72
    %v156 = vunpack.c.h.b16 %v72
    %v157 = vunpack.c.l.b16 %v73
    %v158 = vunpack.c.h.b16 %v73
    %v159 = vunpack.c.l.b16 %v74
    %v160 = vunpack.c.h.b16 %v74
    %v161 = vunpack.c.l.b16 %v75
    %v162 = vunpack.c.h.b16 %v75
    %v163 = vunpack.c.l.b16 %v76
    %v164 = vunpack.c.h.b16 %v76
    %v165 = vunpack.c.l.b16 %v77
    %v166 = vunpack.c.h.b16 %v77
    %v167 = vunpack.c.l.b16 %v78
    %v168 = vunpack.c.h.b16 %v78
    %v169 = vunpack.c.l.b16 %v79
    %v170 = vunpack.c.h.b16 %v79
    %v171 = vunpack.c.l.b16 %v80
    %v172 = vunpack.c.h.b16 %v80
    %v173 = vunpack.c.l.b16 %v81
    %v174 = vunpack.c.h.b16 %v81
    %v175 = vpack.c.b16 %v139, %v137
    %v176 = vpack.c.b16 %v140, %v138
    %v177 = vpack.c.b16 %v143, %v141
    %v178 = vpack.c.b16 %v144, %v142
    %v179 = vpack.c.b16 %v147, %v145
    %v180 = vpack.c.b16 %v148, %v146
    %v181 = vpack.c.b16 %v151, %v149
    %v182 = vpack.c.b16 %v152, %v150
    %v183 = vpack.c.b16 %v155, %v153
    %v184 = vpack.c.b16 %v156, %v154
    %v185 = vpack.c.b16 %v159, %v157
    %v186 = vpack.c.b16 %v160, %v158
    %v187 = vpack.c.b16 %v163, %v161
    %v188 = vpack.c.b16 %v164, %v162
    %v189 = vpack.c.b16 %v167, %v165
    %v190 = vpack.c.b16 %v168, %v166
    %v191 = vpack.c.b16 %v171, %v169
    %v192 = vpack.c.b16 %v172, %v170
    %v193 = vpack.c.b16 %v173, %v173
    %v194 = vpack.c.b16 %v174, %v174
    %vm213 = vcmask 171008
    %v215 = vsel %vm213, %v107, 0
    %v218 = vsel %vm213, %v109, 0
    %v221 = vsel %vm213, %v111, 0
    %v224 = vsel %vm213, %v113, 0
    %vm226 = vcmask 1041408
    %vm227 = vcmask 1042432
    %v228 = vsel %vm226, 4294967295, 65535
    %v229 = vsel %vm227, %v228, 0
    %v231 = vand.u32 %v193, %v229
    %v234 = vand.u32 %v194, %v229
    %236 = vmatpush.bf16.msra.mxu0 %v189
    %237 = vmatpush.bf16.msra.mxu0 %v187
    %238 = vmatpush.bf16.msra.mxu0 %v185
    %239 = vmatpush.bf16.msra.mxu0 %v183
    %240 = vmatpush.bf16.msra.mxu0 %v181
    %241 = vmatpush.bf16.msra.mxu0 %v179
    %242 = vmatpush.bf16.msra.mxu0 %v177
    %243 = vmatpush.bf16.msra.mxu0 %v175
    %244 = vmatmul.bf16.gmra.mxu0 %v106
    %v245 = vpop.f32.mrf.mxu0
    %v246 = vadd.f32 0.0, %v245
    %v247 = vpop.f32.mrf.mxu0
    %v248 = vadd.f32 0.0, %v247
    %249 = vmatmul.bf16.gmra.mxu0 %v108
    %v250 = vpop.f32.mrf.mxu0
    %v251 = vadd.f32 0.0, %v250
    %v252 = vpop.f32.mrf.mxu0
    %v253 = vadd.f32 0.0, %v252
    %254 = vmatmul.bf16.gmra.mxu0 %v110
    %v255 = vpop.f32.mrf.mxu0
    %v256 = vadd.f32 0.0, %v255
    %v257 = vpop.f32.mrf.mxu0
    %v258 = vadd.f32 0.0, %v257
    %259 = vmatmul.bf16.gmra.mxu0 %v112
    %v260 = vpop.f32.mrf.mxu0
    %v261 = vadd.f32 0.0, %v260
    %v262 = vpop.f32.mrf.mxu0
    %v263 = vadd.f32 0.0, %v262
    %264 = vdwg.mxu0
    %265 = vmatpush.bf16.msra.mxu0 0
    %266 = vmatpush.bf16.msra.mxu0 0
    %267 = vmatpush.bf16.msra.mxu0 0
    %268 = vmatpush.bf16.msra.mxu0 0
    %269 = vmatpush.bf16.msra.mxu0 0
    %270 = vmatpush.bf16.msra.mxu0 0
    %271 = vmatpush.bf16.msra.mxu0 %v231
    %272 = vmatpush.bf16.msra.mxu0 %v191
    %273 = vmatmul.bf16.gmra.mxu0 %v215
    %v274 = vpop.f32.mrf.mxu0
    %v275 = vadd.f32 %v246, %v274
    %v276 = vpop.f32.mrf.mxu0
    %v277 = vadd.f32 %v248, %v276
    %278 = vmatmul.bf16.gmra.mxu0 %v218
    %v279 = vpop.f32.mrf.mxu0
    %v280 = vadd.f32 %v251, %v279
    %v281 = vpop.f32.mrf.mxu0
    %v282 = vadd.f32 %v253, %v281
    %283 = vmatmul.bf16.gmra.mxu0 %v221
    %v284 = vpop.f32.mrf.mxu0
    %v285 = vadd.f32 %v256, %v284
    %v286 = vpop.f32.mrf.mxu0
    %v287 = vadd.f32 %v258, %v286
    %288 = vmatmul.bf16.gmra.mxu0 %v224
    %v289 = vpop.f32.mrf.mxu0
    %v290 = vadd.f32 %v261, %v289
    %v291 = vpop.f32.mrf.mxu0
    %v292 = vadd.f32 %v263, %v291
    %293 = vdwg.mxu0
    %294 = vmatpush.bf16.msra.mxu0 %v190
    %295 = vmatpush.bf16.msra.mxu0 %v188
    %296 = vmatpush.bf16.msra.mxu0 %v186
    %297 = vmatpush.bf16.msra.mxu0 %v184
    %298 = vmatpush.bf16.msra.mxu0 %v182
    %299 = vmatpush.bf16.msra.mxu0 %v180
    %300 = vmatpush.bf16.msra.mxu0 %v178
    %301 = vmatpush.bf16.msra.mxu0 %v176
    %302 = vmatmul.bf16.gmra.mxu0 %v106
    %v303 = vpop.f32.mrf.mxu0
    %v304 = vadd.f32 0.0, %v303
    %v305 = vpop.f32.mrf.mxu0
    %v306 = vadd.f32 0.0, %v305
    %307 = vmatmul.bf16.gmra.mxu0 %v108
    %v308 = vpop.f32.mrf.mxu0
    %v309 = vadd.f32 0.0, %v308
    %v310 = vpop.f32.mrf.mxu0
    %v311 = vadd.f32 0.0, %v310
    %312 = vmatmul.bf16.gmra.mxu0 %v110
    %v313 = vpop.f32.mrf.mxu0
    %v314 = vadd.f32 0.0, %v313
    %v315 = vpop.f32.mrf.mxu0
    %v316 = vadd.f32 0.0, %v315
    %317 = vmatmul.bf16.gmra.mxu0 %v112
    %v318 = vpop.f32.mrf.mxu0
    %v319 = vadd.f32 0.0, %v318
    %v320 = vpop.f32.mrf.mxu0
    %v321 = vadd.f32 0.0, %v320
    %322 = vdwg.mxu0
    %323 = vmatpush.bf16.msra.mxu0 0
    %324 = vmatpush.bf16.msra.mxu0 0
    %325 = vmatpush.bf16.msra.mxu0 0
    %326 = vmatpush.bf16.msra.mxu0 0
    %327 = vmatpush.bf16.msra.mxu0 0
    %328 = vmatpush.bf16.msra.mxu0 0
    %329 = vmatpush.bf16.msra.mxu0 %v234
    %330 = vmatpush.bf16.msra.mxu0 %v192
    %331 = vmatmul.bf16.gmra.mxu0 %v215
    %v332 = vpop.f32.mrf.mxu0
    %v333 = vadd.f32 %v304, %v332
    %v334 = vpop.f32.mrf.mxu0
    %v335 = vadd.f32 %v306, %v334
    %336 = vmatmul.bf16.gmra.mxu0 %v218
    %v337 = vpop.f32.mrf.mxu0
    %v338 = vadd.f32 %v309, %v337
    %v339 = vpop.f32.mrf.mxu0
    %v340 = vadd.f32 %v311, %v339
    %341 = vmatmul.bf16.gmra.mxu0 %v221
    %v342 = vpop.f32.mrf.mxu0
    %v343 = vadd.f32 %v314, %v342
    %v344 = vpop.f32.mrf.mxu0
    %v345 = vadd.f32 %v316, %v344
    %346 = vmatmul.bf16.gmra.mxu0 %v224
    %v347 = vpop.f32.mrf.mxu0
    %v348 = vadd.f32 %v319, %v347
    %v349 = vpop.f32.mrf.mxu0
    %v350 = vadd.f32 %v321, %v349
    %351 = vdwg.mxu0
    %v352 = vpack.c.bf16 %v333, %v275
    %v353 = vpack.c.bf16 %v335, %v277
    %v354 = vpack.c.bf16 %v338, %v280
    %v355 = vpack.c.bf16 %v340, %v282
    %v356 = vpack.c.bf16 %v343, %v285
    %v357 = vpack.c.bf16 %v345, %v287
    %v358 = vpack.c.bf16 %v348, %v290
    %v359 = vpack.c.bf16 %v350, %v292
    %v364 = vunpack.c.l.b16 %v352
    %v365 = vunpack.c.h.b16 %v352
    %v366 = vunpack.c.l.b16 %v353
    %v367 = vunpack.c.h.b16 %v353
    %v368 = vunpack.c.l.b16 %v354
    %v369 = vunpack.c.h.b16 %v354
    %v370 = vunpack.c.l.b16 %v355
    %v371 = vunpack.c.h.b16 %v355
    %v372 = vpack.c.b16 %v366, %v364
    %v373 = vpack.c.b16 %v367, %v365
    %v374 = vpack.c.b16 %v370, %v368
    %v375 = vpack.c.b16 %v371, %v369
    %v379 = vsel %vm213, %v373, 0
    %v382 = vsel %vm213, %v375, 0
    %384 = vmatpush.bf16.xpose.msra.mxu0 0
    %385 = vmatpush.bf16.xpose.msra.mxu0 0
    %386 = vmatpush.bf16.xpose.msra.mxu0 0
    %387 = vmatpush.bf16.xpose.msra.mxu0 0
    %388 = vmatpush.bf16.xpose.msra.mxu0 0
    %389 = vmatpush.bf16.xpose.msra.mxu0 0
    %390 = vmatpush.bf16.xpose.msra.mxu0 %v108
    %391 = vmatpush.bf16.xpose.msra.mxu0 %v106
    %392 = vmatmul.bf16.gmra.mxu0 %v372
    %v393 = vpop.f32.mrf.mxu0
    %v394 = vadd.f32 0.0, %v393
    %v395 = vpop.f32.mrf.mxu0
    %v396 = vadd.f32 0.0, %v395
    %397 = vmatmul.bf16.gmra.mxu0 %v374
    %v398 = vpop.f32.mrf.mxu0
    %v399 = vadd.f32 0.0, %v398
    %v400 = vpop.f32.mrf.mxu0
    %v401 = vadd.f32 0.0, %v400
    %402 = vdwg.mxu0
    %403 = vmatpush.bf16.xpose.msra.mxu0 0
    %404 = vmatpush.bf16.xpose.msra.mxu0 0
    %405 = vmatpush.bf16.xpose.msra.mxu0 0
    %406 = vmatpush.bf16.xpose.msra.mxu0 0
    %407 = vmatpush.bf16.xpose.msra.mxu0 0
    %408 = vmatpush.bf16.xpose.msra.mxu0 0
    %409 = vmatpush.bf16.xpose.msra.mxu0 %v218
    %410 = vmatpush.bf16.xpose.msra.mxu0 %v215
    %411 = vmatmul.bf16.gmra.mxu0 %v379
    %v412 = vpop.f32.mrf.mxu0
    %v413 = vadd.f32 %v394, %v412
    %v414 = vpop.f32.mrf.mxu0
    %v415 = vadd.f32 %v396, %v414
    %416 = vmatmul.bf16.gmra.mxu0 %v382
    %v417 = vpop.f32.mrf.mxu0
    %v418 = vadd.f32 %v399, %v417
    %v419 = vpop.f32.mrf.mxu0
    %v420 = vadd.f32 %v401, %v419
    %421 = vdwg.mxu0
    %v426 = vunpack.c.l.b16 %v356
    %v427 = vunpack.c.h.b16 %v356
    %v428 = vunpack.c.l.b16 %v357
    %v429 = vunpack.c.h.b16 %v357
    %v430 = vunpack.c.l.b16 %v358
    %v431 = vunpack.c.h.b16 %v358
    %v432 = vunpack.c.l.b16 %v359
    %v433 = vunpack.c.h.b16 %v359
    %v434 = vpack.c.b16 %v428, %v426
    %v435 = vpack.c.b16 %v429, %v427
    %v436 = vpack.c.b16 %v432, %v430
    %v437 = vpack.c.b16 %v433, %v431
    %v441 = vsel %vm213, %v435, 0
    %v444 = vsel %vm213, %v437, 0
    %446 = vmatpush.bf16.xpose.msra.mxu0 0
    %447 = vmatpush.bf16.xpose.msra.mxu0 0
    %448 = vmatpush.bf16.xpose.msra.mxu0 0
    %449 = vmatpush.bf16.xpose.msra.mxu0 0
    %450 = vmatpush.bf16.xpose.msra.mxu0 0
    %451 = vmatpush.bf16.xpose.msra.mxu0 0
    %452 = vmatpush.bf16.xpose.msra.mxu0 %v112
    %453 = vmatpush.bf16.xpose.msra.mxu0 %v110
    %454 = vmatmul.bf16.gmra.mxu0 %v434
    %v455 = vpop.f32.mrf.mxu0
    %v456 = vadd.f32 0.0, %v455
    %v457 = vpop.f32.mrf.mxu0
    %v458 = vadd.f32 0.0, %v457
    %459 = vmatmul.bf16.gmra.mxu0 %v436
    %v460 = vpop.f32.mrf.mxu0
    %v461 = vadd.f32 0.0, %v460
    %v462 = vpop.f32.mrf.mxu0
    %v463 = vadd.f32 0.0, %v462
    %464 = vdwg.mxu0
    %465 = vmatpush.bf16.xpose.msra.mxu0 0
    %466 = vmatpush.bf16.xpose.msra.mxu0 0
    %467 = vmatpush.bf16.xpose.msra.mxu0 0
    %468 = vmatpush.bf16.xpose.msra.mxu0 0
    %469 = vmatpush.bf16.xpose.msra.mxu0 0
    %470 = vmatpush.bf16.xpose.msra.mxu0 0
    %471 = vmatpush.bf16.xpose.msra.mxu0 %v224
    %472 = vmatpush.bf16.xpose.msra.mxu0 %v221
    %473 = vmatmul.bf16.gmra.mxu0 %v441
    %v474 = vpop.f32.mrf.mxu0
    %v475 = vadd.f32 %v456, %v474
    %v476 = vpop.f32.mrf.mxu0
    %v477 = vadd.f32 %v458, %v476
    %478 = vmatmul.bf16.gmra.mxu0 %v444
    %v479 = vpop.f32.mrf.mxu0
    %v480 = vadd.f32 %v461, %v479
    %v481 = vpop.f32.mrf.mxu0
    %v482 = vadd.f32 %v463, %v481
    %483 = vdwg.mxu0
    %vm484 = vcmask 261120
    %v485 = vsel %vm484, %v413, -inf
    %486 = vmax.xlane.f32.xlu0 %v485
    %v487 = vpop.xlane.xlu0 %486
    %v488 = vsel %vm484, %v415, -inf
    %489 = vmax.xlane.f32.xlu0 %v488
    %v490 = vpop.xlane.xlu0 %489
    %v491 = vsel %vm484, %v418, -inf
    %492 = vmax.xlane.f32.xlu0 %v491
    %v493 = vpop.xlane.xlu0 %492
    %v494 = vsel %vm484, %v420, -inf
    %495 = vmax.xlane.f32.xlu0 %v494
    %v496 = vpop.xlane.xlu0 %495
    %v497 = vsel %vm484, %v475, -inf
    %498 = vmax.xlane.f32.xlu0 %v497
    %v499 = vpop.xlane.xlu0 %498
    %v500 = vsel %vm484, %v477, -inf
    %501 = vmax.xlane.f32.xlu0 %v500
    %v502 = vpop.xlane.xlu0 %501
    %v503 = vsel %vm484, %v480, -inf
    %504 = vmax.xlane.f32.xlu0 %v503
    %v505 = vpop.xlane.xlu0 %504
    %v506 = vsel %vm484, %v482, -inf
    %507 = vmax.xlane.f32.xlu0 %v506
    %v508 = vpop.xlane.xlu0 %507
    %v509 = vsub.f32 %v413, %v487
    %v510 = vsub.f32 %v415, %v490
    %v511 = vsub.f32 %v418, %v493
    %v512 = vsub.f32 %v420, %v496
    %v513 = vsub.f32 %v475, %v499
    %v514 = vsub.f32 %v477, %v502
    %v515 = vsub.f32 %v480, %v505
    %v516 = vsub.f32 %v482, %v508
    %v517 = vmul.f32 %v509, 1.442695
    %v518 = vpow.pop %v517
    %v519 = vmul.f32 %v510, 1.442695
    %v520 = vpow.pop %v519
    %v521 = vmul.f32 %v511, 1.442695
    %v522 = vpow.pop %v521
    %v523 = vmul.f32 %v512, 1.442695
    %v524 = vpow.pop %v523
    %v525 = vmul.f32 %v513, 1.442695
    %v526 = vpow.pop %v525
    %v527 = vmul.f32 %v514, 1.442695
    %v528 = vpow.pop %v527
    %v529 = vmul.f32 %v515, 1.442695
    %v530 = vpow.pop %v529
    %v531 = vmul.f32 %v516, 1.442695
    %v532 = vpow.pop %v531
    %v533 = vsel %vm484, %v518, 0.0
    %534 = vadd.xlane.f32.xlu0 %v533
    %v535 = vpop.xlane.xlu0 %534
    %v536 = vsel %vm484, %v520, 0.0
    %537 = vadd.xlane.f32.xlu0 %v536
    %v538 = vpop.xlane.xlu0 %537
    %v539 = vsel %vm484, %v522, 0.0
    %540 = vadd.xlane.f32.xlu0 %v539
    %v541 = vpop.xlane.xlu0 %540
    %v542 = vsel %vm484, %v524, 0.0
    %543 = vadd.xlane.f32.xlu0 %v542
    %v544 = vpop.xlane.xlu0 %543
    %v545 = vsel %vm484, %v526, 0.0
    %546 = vadd.xlane.f32.xlu0 %v545
    %v547 = vpop.xlane.xlu0 %546
    %v548 = vsel %vm484, %v528, 0.0
    %549 = vadd.xlane.f32.xlu0 %v548
    %v550 = vpop.xlane.xlu0 %549
    %v551 = vsel %vm484, %v530, 0.0
    %552 = vadd.xlane.f32.xlu0 %v551
    %v553 = vpop.xlane.xlu0 %552
    %v554 = vsel %vm484, %v532, 0.0
    %555 = vadd.xlane.f32.xlu0 %v554
    %v556 = vpop.xlane.xlu0 %555
    %v557 = vpack.c.bf16 %v518, %v518
    %v558 = vpack.c.bf16 %v520, %v520
    %v559 = vpack.c.bf16 %v522, %v522
    %v560 = vpack.c.bf16 %v524, %v524
    %v561 = vpack.c.bf16 %v526, %v526
    %v562 = vpack.c.bf16 %v528, %v528
    %v563 = vpack.c.bf16 %v530, %v530
    %v564 = vpack.c.bf16 %v532, %v532
    %v569 = vunpack.c.l.b16 %v557
    %v570 = vunpack.c.l.b16 %v558
    %v571 = vunpack.c.l.b16 %v559
    %v572 = vunpack.c.l.b16 %v560
    %v573 = vpack.c.b16 %v570, %v569
    %v574 = vpack.c.b16 %v572, %v571
    %v578 = vsel %vm484, %v573, 0
    %v581 = vsel %vm484, %v574, 0
    %583 = vmatpush.bf16.msra.mxu0 0
    %584 = vmatpush.bf16.msra.mxu0 0
    %585 = vmatpush.bf16.msra.mxu0 0
    %586 = vmatpush.bf16.msra.mxu0 0
    %587 = vmatpush.bf16.msra.mxu0 0
    %588 = vmatpush.bf16.msra.mxu0 0
    %589 = vmatpush.bf16.msra.mxu0 %v108
    %590 = vmatpush.bf16.msra.mxu0 %v106
    %591 = vmatmul.bf16.gmra.mxu0 %v578
    %v592 = vpop.f32.mrf.mxu0
    %v593 = vadd.f32 0.0, %v592
    %v594 = vpop.f32.mrf.mxu0
    %v595 = vadd.f32 0.0, %v594
    %596 = vmatmul.bf16.gmra.mxu0 %v581
    %v597 = vpop.f32.mrf.mxu0
    %v598 = vadd.f32 0.0, %v597
    %v599 = vpop.f32.mrf.mxu0
    %v600 = vadd.f32 0.0, %v599
    %601 = vdwg.mxu0
    %602 = vmatpush.bf16.msra.mxu0 0
    %603 = vmatpush.bf16.msra.mxu0 0
    %604 = vmatpush.bf16.msra.mxu0 0
    %605 = vmatpush.bf16.msra.mxu0 0
    %606 = vmatpush.bf16.msra.mxu0 0
    %607 = vmatpush.bf16.msra.mxu0 0
    %608 = vmatpush.bf16.msra.mxu0 %v109
    %609 = vmatpush.bf16.msra.mxu0 %v107
    %610 = vmatmul.bf16.gmra.mxu0 %v578
    %v611 = vpop.f32.mrf.mxu0
    %v612 = vadd.f32 0.0, %v611
    %v613 = vpop.f32.mrf.mxu0
    %v614 = vadd.f32 0.0, %v613
    %615 = vmatmul.bf16.gmra.mxu0 %v581
    %v616 = vpop.f32.mrf.mxu0
    %v617 = vadd.f32 0.0, %v616
    %v618 = vpop.f32.mrf.mxu0
    %v619 = vadd.f32 0.0, %v618
    %620 = vdwg.mxu0
    %v625 = vunpack.c.l.b16 %v561
    %v626 = vunpack.c.l.b16 %v562
    %v627 = vunpack.c.l.b16 %v563
    %v628 = vunpack.c.l.b16 %v564
    %v629 = vpack.c.b16 %v626, %v625
    %v630 = vpack.c.b16 %v628, %v627
    %v634 = vsel %vm484, %v629, 0
    %v637 = vsel %vm484, %v630, 0
    %639 = vmatpush.bf16.msra.mxu0 0
    %640 = vmatpush.bf16.msra.mxu0 0
    %641 = vmatpush.bf16.msra.mxu0 0
    %642 = vmatpush.bf16.msra.mxu0 0
    %643 = vmatpush.bf16.msra.mxu0 0
    %644 = vmatpush.bf16.msra.mxu0 0
    %645 = vmatpush.bf16.msra.mxu0 %v112
    %646 = vmatpush.bf16.msra.mxu0 %v110
    %647 = vmatmul.bf16.gmra.mxu0 %v634
    %v648 = vpop.f32.mrf.mxu0
    %v649 = vadd.f32 0.0, %v648
    %v650 = vpop.f32.mrf.mxu0
    %v651 = vadd.f32 0.0, %v650
    %652 = vmatmul.bf16.gmra.mxu0 %v637
    %v653 = vpop.f32.mrf.mxu0
    %v654 = vadd.f32 0.0, %v653
    %v655 = vpop.f32.mrf.mxu0
    %v656 = vadd.f32 0.0, %v655
    %657 = vdwg.mxu0
    %658 = vmatpush.bf16.msra.mxu0 0
    %659 = vmatpush.bf16.msra.mxu0 0
    %660 = vmatpush.bf16.msra.mxu0 0
    %661 = vmatpush.bf16.msra.mxu0 0
    %662 = vmatpush.bf16.msra.mxu0 0
    %663 = vmatpush.bf16.msra.mxu0 0
    %664 = vmatpush.bf16.msra.mxu0 %v113
    %665 = vmatpush.bf16.msra.mxu0 %v111
    %666 = vmatmul.bf16.gmra.mxu0 %v634
    %v667 = vpop.f32.mrf.mxu0
    %v668 = vadd.f32 0.0, %v667
    %v669 = vpop.f32.mrf.mxu0
    %v670 = vadd.f32 0.0, %v669
    %671 = vmatmul.bf16.gmra.mxu0 %v637
    %v672 = vpop.f32.mrf.mxu0
    %v673 = vadd.f32 0.0, %v672
    %v674 = vpop.f32.mrf.mxu0
    %v675 = vadd.f32 0.0, %v674
    %676 = vdwg.mxu0
    %v677 = vrcp.pop %v535
    %v678 = vrcp.pop %v538
    %v679 = vrcp.pop %v541
    %v680 = vrcp.pop %v544
    %v681 = vrcp.pop %v547
    %v682 = vrcp.pop %v550
    %v683 = vrcp.pop %v553
    %v684 = vrcp.pop %v556
    %v685 = vmul.f32 %v593, %v677
    %v686 = vmul.f32 %v612, %v677
    %v687 = vmul.f32 %v595, %v678
    %v688 = vmul.f32 %v614, %v678
    %v689 = vmul.f32 %v598, %v679
    %v690 = vmul.f32 %v617, %v679
    %v691 = vmul.f32 %v600, %v680
    %v692 = vmul.f32 %v619, %v680
    %v693 = vmul.f32 %v649, %v681
    %v694 = vmul.f32 %v668, %v681
    %v695 = vmul.f32 %v651, %v682
    %v696 = vmul.f32 %v670, %v682
    %v697 = vmul.f32 %v654, %v683
    %v698 = vmul.f32 %v673, %v683
    %v699 = vmul.f32 %v656, %v684
    %v700 = vmul.f32 %v675, %v684
    %v701 = vpack.c.bf16 %v686, %v685
    %v702 = vpack.c.bf16 %v688, %v687
    %v703 = vpack.c.bf16 %v690, %v689
    %v704 = vpack.c.bf16 %v692, %v691
    %v705 = vpack.c.bf16 %v694, %v693
    %v706 = vpack.c.bf16 %v696, %v695
    %v707 = vpack.c.bf16 %v698, %v697
    %v708 = vpack.c.bf16 %v700, %v699
    %v709 = vld [vmem:[%s3] sm:$0xf]
    %v710 = vld [vmem:[%s3 + $0x4] sm:$0xf]
    %v711 = vld [vmem:[%s3 + $0x8] sm:$0xf]
    %v712 = vld [vmem:[%s3 + $0xc] sm:$0xf]
    %v713 = vld [vmem:[%s3 + $0x10] sm:$0xf]
    %v714 = vld [vmem:[%s3 + $0x14] sm:$0xf]
    %v715 = vld [vmem:[%s3 + $0x18] sm:$0xf]
    %v716 = vld [vmem:[%s3 + $0x1c] sm:$0xf]
    %v717 = vld [vmem:[%s3 + $0x20] sm:$0xf]
    %v718 = vld [vmem:[%s3 + $0x24] sm:$0xf]
    %v719 = vld [vmem:[%s3 + $0x28] sm:$0xf]
    %v720 = vld [vmem:[%s3 + $0x2c] sm:$0xf]
    %v721 = vld [vmem:[%s3 + $0x30] sm:$0xf]
    %v722 = vld [vmem:[%s3 + $0x34] sm:$0xf]
    %v723 = vld [vmem:[%s3 + $0x38] sm:$0xf]
    %v724 = vld [vmem:[%s3 + $0x3c] sm:$0xf]
    %v725 = vld [vmem:[%s3 + $0x40] sm:$0xf]
    %v726 = vld [vmem:[%s3 + $0x44] sm:$0xf]
    %v727 = vld [vmem:[%s3 + $0x48] sm:$0x7]
    %v728 = vld [vmem:[#allocation2] sm:$0x1]
    %v730 = vperm.slane %v728, 0
    %v740 = vunpack.c.l.b16 %v701
    %v741 = vunpack.c.h.b16 %v701
    %v742 = vunpack.c.l.b16 %v702
    %v743 = vunpack.c.h.b16 %v702
    %v744 = vunpack.c.l.b16 %v703
    %v745 = vunpack.c.h.b16 %v703
    %v746 = vunpack.c.l.b16 %v704
    %v747 = vunpack.c.h.b16 %v704
    %v748 = vunpack.c.l.b16 %v705
    %v749 = vunpack.c.h.b16 %v705
    %v750 = vunpack.c.l.b16 %v706
    %v751 = vunpack.c.h.b16 %v706
    %v752 = vunpack.c.l.b16 %v707
    %v753 = vunpack.c.h.b16 %v707
    %v754 = vunpack.c.l.b16 %v708
    %v755 = vunpack.c.h.b16 %v708
    %v756 = vpack.c.b16 %v742, %v740
    %v757 = vpack.c.b16 %v743, %v741
    %v758 = vpack.c.b16 %v746, %v744
    %v759 = vpack.c.b16 %v747, %v745
    %v760 = vpack.c.b16 %v750, %v748
    %v761 = vpack.c.b16 %v751, %v749
    %v762 = vpack.c.b16 %v754, %v752
    %v763 = vpack.c.b16 %v755, %v753
    %v787 = vunpack.c.l.b16 %v709
    %v788 = vunpack.c.l.b16 %v710
    %v789 = vunpack.c.l.b16 %v711
    %v790 = vunpack.c.l.b16 %v712
    %v791 = vunpack.c.l.b16 %v713
    %v792 = vunpack.c.l.b16 %v714
    %v793 = vunpack.c.l.b16 %v715
    %v794 = vunpack.c.l.b16 %v716
    %v795 = vunpack.c.l.b16 %v717
    %v796 = vunpack.c.l.b16 %v718
    %v797 = vunpack.c.l.b16 %v719
    %v798 = vunpack.c.l.b16 %v720
    %v799 = vunpack.c.l.b16 %v721
    %v800 = vunpack.c.l.b16 %v722
    %v801 = vunpack.c.l.b16 %v723
    %v802 = vunpack.c.l.b16 %v724
    %v803 = vunpack.c.l.b16 %v725
    %v804 = vunpack.c.l.b16 %v726
    %v805 = vunpack.c.l.b16 %v727
    %v806 = vpack.c.b16 %v788, %v787
    %v807 = vpack.c.b16 %v790, %v789
    %v808 = vpack.c.b16 %v792, %v791
    %v809 = vpack.c.b16 %v794, %v793
    %v810 = vpack.c.b16 %v796, %v795
    %v811 = vpack.c.b16 %v798, %v797
    %v812 = vpack.c.b16 %v800, %v799
    %v813 = vpack.c.b16 %v802, %v801
    %v814 = vpack.c.b16 %v804, %v803
    %v815 = vpack.c.b16 %v805, %v805
    %v826 = vsel %vm213, %v757, 0
    %v829 = vsel %vm213, %v759, 0
    %v832 = vsel %vm213, %v761, 0
    %v835 = vsel %vm213, %v763, 0
    %v838 = vand.u32 %v815, %v229
    %840 = vmatpush.bf16.msra.mxu0 %v813
    %841 = vmatpush.bf16.msra.mxu0 %v812
    %842 = vmatpush.bf16.msra.mxu0 %v811
    %843 = vmatpush.bf16.msra.mxu0 %v810
    %844 = vmatpush.bf16.msra.mxu0 %v809
    %845 = vmatpush.bf16.msra.mxu0 %v808
    %846 = vmatpush.bf16.msra.mxu0 %v807
    %847 = vmatpush.bf16.msra.mxu0 %v806
    %848 = vmatmul.bf16.gmra.mxu0 %v756
    %v849 = vpop.f32.mrf.mxu0
    %v850 = vadd.f32 %v730, %v849
    %v851 = vpop.f32.mrf.mxu0
    %v852 = vadd.f32 %v730, %v851
    %853 = vmatmul.bf16.gmra.mxu0 %v758
    %v854 = vpop.f32.mrf.mxu0
    %v855 = vadd.f32 %v730, %v854
    %v856 = vpop.f32.mrf.mxu0
    %v857 = vadd.f32 %v730, %v856
    %858 = vmatmul.bf16.gmra.mxu0 %v760
    %v859 = vpop.f32.mrf.mxu0
    %v860 = vadd.f32 %v730, %v859
    %v861 = vpop.f32.mrf.mxu0
    %v862 = vadd.f32 %v730, %v861
    %863 = vmatmul.bf16.gmra.mxu0 %v762
    %v864 = vpop.f32.mrf.mxu0
    %v865 = vadd.f32 %v730, %v864
    %v866 = vpop.f32.mrf.mxu0
    %v867 = vadd.f32 %v730, %v866
    %868 = vdwg.mxu0
    %869 = vmatpush.bf16.msra.mxu0 0
    %870 = vmatpush.bf16.msra.mxu0 0
    %871 = vmatpush.bf16.msra.mxu0 0
    %872 = vmatpush.bf16.msra.mxu0 0
    %873 = vmatpush.bf16.msra.mxu0 0
    %874 = vmatpush.bf16.msra.mxu0 0
    %875 = vmatpush.bf16.msra.mxu0 %v838
    %876 = vmatpush.bf16.msra.mxu0 %v814
    %877 = vmatmul.bf16.gmra.mxu0 %v826
    %v878 = vpop.f32.mrf.mxu0
    %v879 = vadd.f32 %v850, %v878
    %v880 = vpop.f32.mrf.mxu0
    %v881 = vadd.f32 %v852, %v880
    %882 = vmatmul.bf16.gmra.mxu0 %v829
    %v883 = vpop.f32.mrf.mxu0
    %v884 = vadd.f32 %v855, %v883
    %v885 = vpop.f32.mrf.mxu0
    %v886 = vadd.f32 %v857, %v885
    %887 = vmatmul.bf16.gmra.mxu0 %v832
    %v888 = vpop.f32.mrf.mxu0
    %v889 = vadd.f32 %v860, %v888
    %v890 = vpop.f32.mrf.mxu0
    %v891 = vadd.f32 %v862, %v890
    %892 = vmatmul.bf16.gmra.mxu0 %v835
    %v893 = vpop.f32.mrf.mxu0
    %v894 = vadd.f32 %v865, %v893
    %v895 = vpop.f32.mrf.mxu0
    %v896 = vadd.f32 %v867, %v895
    %897 = vdwg.mxu0
    %vm898 = vcmp.gt.f32.partialorder %v879, 0.0
    %vm899 = vcmp.gt.f32.partialorder %v881, 0.0
    %vm900 = vcmp.gt.f32.partialorder %v884, 0.0
    %vm901 = vcmp.gt.f32.partialorder %v886, 0.0
    %vm902 = vcmp.gt.f32.partialorder %v889, 0.0
    %vm903 = vcmp.gt.f32.partialorder %v891, 0.0
    %vm904 = vcmp.gt.f32.partialorder %v894, 0.0
    %vm905 = vcmp.gt.f32.partialorder %v896, 0.0
    %v906 = vmul.f32 %v879, 0.2
    %v907 = vmul.f32 %v881, 0.2
    %v908 = vmul.f32 %v884, 0.2
    %v909 = vmul.f32 %v886, 0.2
    %v910 = vmul.f32 %v889, 0.2
    %v911 = vmul.f32 %v891, 0.2
    %v912 = vmul.f32 %v894, 0.2
    %v913 = vmul.f32 %v896, 0.2
    %v914 = vsel %vm898, %v879, %v906
    %v915 = vsel %vm899, %v881, %v907
    %v916 = vsel %vm900, %v884, %v908
    %v917 = vsel %vm901, %v886, %v909
    %v918 = vsel %vm902, %v889, %v910
    %v919 = vsel %vm903, %v891, %v911
    %v920 = vsel %vm904, %v894, %v912
    %v921 = vsel %vm905, %v896, %v913
    %v922 = vpack.c.bf16 %v915, %v914
    %v923 = vpack.c.bf16 %v917, %v916
    %v924 = vpack.c.bf16 %v919, %v918
    %v925 = vpack.c.bf16 %v921, %v920
    %v926 = vld [vmem:[%s5] sm:$0xff]
    %v927 = vld [vmem:[%s5 + $0x8] sm:$0xff]
    %v928 = vld [vmem:[%s5 + $0x10] sm:$0xff]
    %v929 = vld [vmem:[%s5 + $0x18] sm:$0xff]
    %v930 = vld [vmem:[%s5 + $0x20] sm:$0xff]
    %v931 = vld [vmem:[%s5 + $0x28] sm:$0xff]
    %v932 = vld [vmem:[%s5 + $0x30] sm:$0xff]
    %v933 = vld [vmem:[%s5 + $0x38] sm:$0xff]
    %v934 = vld [vmem:[%s5 + $0x40] sm:$0xff]
    %v935 = vld [vmem:[%s5 + $0x48] sm:$0xff]
    %v936 = vld [vmem:[%s5 + $0x50] sm:$0xff]
    %v937 = vld [vmem:[%s5 + $0x58] sm:$0xff]
    %v938 = vld [vmem:[#allocation4] sm:$0x3]
    %v940 = vperm.slane %v938, 0
    %v941 = vperm.slane %v938, 1
    %v956 = vunpack.c.l.b16 %v926
    %v957 = vunpack.c.h.b16 %v926
    %v958 = vunpack.c.l.b16 %v927
    %v959 = vunpack.c.h.b16 %v927
    %v960 = vunpack.c.l.b16 %v928
    %v961 = vunpack.c.h.b16 %v928
    %v962 = vunpack.c.l.b16 %v929
    %v963 = vunpack.c.h.b16 %v929
    %v964 = vunpack.c.l.b16 %v930
    %v965 = vunpack.c.h.b16 %v930
    %v966 = vunpack.c.l.b16 %v931
    %v967 = vunpack.c.h.b16 %v931
    %v968 = vunpack.c.l.b16 %v932
    %v969 = vunpack.c.h.b16 %v932
    %v970 = vunpack.c.l.b16 %v933
    %v971 = vunpack.c.h.b16 %v933
    %v972 = vunpack.c.l.b16 %v934
    %v973 = vunpack.c.h.b16 %v934
    %v974 = vunpack.c.l.b16 %v935
    %v975 = vunpack.c.h.b16 %v935
    %v976 = vunpack.c.l.b16 %v936
    %v977 = vunpack.c.h.b16 %v936
    %v978 = vunpack.c.l.b16 %v937
    %v979 = vunpack.c.h.b16 %v937
    %v980 = vpack.c.b16 %v958, %v956
    %v981 = vpack.c.b16 %v959, %v957
    %v982 = vpack.c.b16 %v962, %v960
    %v983 = vpack.c.b16 %v963, %v961
    %v984 = vpack.c.b16 %v966, %v964
    %v985 = vpack.c.b16 %v967, %v965
    %v986 = vpack.c.b16 %v970, %v968
    %v987 = vpack.c.b16 %v971, %v969
    %v988 = vpack.c.b16 %v974, %v972
    %v989 = vpack.c.b16 %v975, %v973
    %v990 = vpack.c.b16 %v978, %v976
    %v991 = vpack.c.b16 %v979, %v977
    %vm1004 = vcmask 785408
    %v1006 = vsel %vm1004, %v922, 0
    %v1009 = vsel %vm1004, %v923, 0
    %v1012 = vsel %vm1004, %v924, 0
    %v1015 = vsel %vm1004, %v925, 0
    %1017 = vmatpush.bf16.msra.mxu0 0
    %1018 = vmatpush.bf16.msra.mxu0 0
    %1019 = vmatpush.bf16.msra.mxu0 %v990
    %1020 = vmatpush.bf16.msra.mxu0 %v988
    %1021 = vmatpush.bf16.msra.mxu0 %v986
    %1022 = vmatpush.bf16.msra.mxu0 %v984
    %1023 = vmatpush.bf16.msra.mxu0 %v982
    %1024 = vmatpush.bf16.msra.mxu0 %v980
    %1025 = vmatmul.bf16.gmra.mxu0 %v1006
    %v1026 = vpop.f32.mrf.mxu0
    %v1027 = vadd.f32 %v940, %v1026
    %v1028 = vpop.f32.mrf.mxu0
    %v1029 = vadd.f32 %v940, %v1028
    %1030 = vmatmul.bf16.gmra.mxu0 %v1009
    %v1031 = vpop.f32.mrf.mxu0
    %v1032 = vadd.f32 %v940, %v1031
    %v1033 = vpop.f32.mrf.mxu0
    %v1034 = vadd.f32 %v940, %v1033
    %1035 = vmatmul.bf16.gmra.mxu0 %v1012
    %v1036 = vpop.f32.mrf.mxu0
    %v1037 = vadd.f32 %v940, %v1036
    %v1038 = vpop.f32.mrf.mxu0
    %v1039 = vadd.f32 %v940, %v1038
    %1040 = vmatmul.bf16.gmra.mxu0 %v1015
    %v1041 = vpop.f32.mrf.mxu0
    %v1042 = vadd.f32 %v940, %v1041
    %v1043 = vpop.f32.mrf.mxu0
    %v1044 = vadd.f32 %v940, %v1043
    %1045 = vdwg.mxu0
    %1046 = vmatpush.bf16.msra.mxu0 0
    %1047 = vmatpush.bf16.msra.mxu0 0
    %1048 = vmatpush.bf16.msra.mxu0 %v991
    %1049 = vmatpush.bf16.msra.mxu0 %v989
    %1050 = vmatpush.bf16.msra.mxu0 %v987
    %1051 = vmatpush.bf16.msra.mxu0 %v985
    %1052 = vmatpush.bf16.msra.mxu0 %v983
    %1053 = vmatpush.bf16.msra.mxu0 %v981
    %1054 = vmatmul.bf16.gmra.mxu0 %v1006
    %v1055 = vpop.f32.mrf.mxu0
    %v1056 = vadd.f32 %v941, %v1055
    %v1057 = vpop.f32.mrf.mxu0
    %v1058 = vadd.f32 %v941, %v1057
    %1059 = vmatmul.bf16.gmra.mxu0 %v1009
    %v1060 = vpop.f32.mrf.mxu0
    %v1061 = vadd.f32 %v941, %v1060
    %v1062 = vpop.f32.mrf.mxu0
    %v1063 = vadd.f32 %v941, %v1062
    %1064 = vmatmul.bf16.gmra.mxu0 %v1012
    %v1065 = vpop.f32.mrf.mxu0
    %v1066 = vadd.f32 %v941, %v1065
    %v1067 = vpop.f32.mrf.mxu0
    %v1068 = vadd.f32 %v941, %v1067
    %1069 = vmatmul.bf16.gmra.mxu0 %v1015
    %v1070 = vpop.f32.mrf.mxu0
    %v1071 = vadd.f32 %v941, %v1070
    %v1072 = vpop.f32.mrf.mxu0
    %v1073 = vadd.f32 %v941, %v1072
    %1074 = vdwg.mxu0
    %v1075 = vld [vmem:[%s1] sm:$0xff]
    %v1076 = vld [vmem:[%s1 + $0x8] sm:$0xff]
    %v1077 = vld [vmem:[%s1 + $0x10] sm:$0xff]
    %v1078 = vld [vmem:[%s1 + $0x18] sm:$0xff]
    %v1079 = vld [vmem:[%s1 + $0x20] sm:$0xff]
    %v1080 = vld [vmem:[%s1 + $0x28] sm:$0xff]
    %v1081 = vld [vmem:[%s1 + $0x30] sm:$0xff]
    %v1082 = vld [vmem:[%s1 + $0x38] sm:$0xff]
    %v1083 = vld [vmem:[%s1 + $0x40] sm:$0xff]
    %v1084 = vld [vmem:[%s1 + $0x48] sm:$0xff]
    %v1085 = vld [vmem:[%s1 + $0x50] sm:$0xff]
    %v1086 = vld [vmem:[%s1 + $0x58] sm:$0xff]
    %v1087 = vld [vmem:[%s1 + $0x60] sm:$0xff]
    %v1088 = vld [vmem:[%s1 + $0x68] sm:$0xff]
    %v1089 = vld [vmem:[%s1 + $0x70] sm:$0xff]
    %v1090 = vld [vmem:[%s1 + $0x78] sm:$0xff]
    %v1091 = vadd.f32 %v1027, %v1075
    %v1092 = vadd.f32 %v1056, %v1076
    %v1093 = vadd.f32 %v1029, %v1077
    %v1094 = vadd.f32 %v1058, %v1078
    %v1095 = vadd.f32 %v1032, %v1079
    %v1096 = vadd.f32 %v1061, %v1080
    %v1097 = vadd.f32 %v1034, %v1081
    %v1098 = vadd.f32 %v1063, %v1082
    %v1099 = vadd.f32 %v1037, %v1083
    %v1100 = vadd.f32 %v1066, %v1084
    %v1101 = vadd.f32 %v1039, %v1085
    %v1102 = vadd.f32 %v1068, %v1086
    %v1103 = vadd.f32 %v1042, %v1087
    %v1104 = vadd.f32 %v1071, %v1088
    %v1105 = vadd.f32 %v1044, %v1089
    %v1106 = vadd.f32 %v1073, %v1090
    %1107 = vst [vmem:[%s7] sm:$0xff] %v1091
    %vm1108 = vcmask 523264
    %1109 = vst.msk [vmem:[%s7 + $0x8] sm:$0xff] %vm1108, %v1092
    %1110 = vst [vmem:[%s7 + $0x10] sm:$0xff] %v1093
    %1111 = vst.msk [vmem:[%s7 + $0x18] sm:$0xff] %vm1108, %v1094
    %1112 = vst [vmem:[%s7 + $0x20] sm:$0xff] %v1095
    %1113 = vst.msk [vmem:[%s7 + $0x28] sm:$0xff] %vm1108, %v1096
    %1114 = vst [vmem:[%s7 + $0x30] sm:$0xff] %v1097
    %1115 = vst.msk [vmem:[%s7 + $0x38] sm:$0xff] %vm1108, %v1098
    %1116 = vst [vmem:[%s7 + $0x40] sm:$0xff] %v1099
    %1117 = vst.msk [vmem:[%s7 + $0x48] sm:$0xff] %vm1108, %v1100
    %1118 = vst [vmem:[%s7 + $0x50] sm:$0xff] %v1101
    %1119 = vst.msk [vmem:[%s7 + $0x58] sm:$0xff] %vm1108, %v1102
    %1120 = vst [vmem:[%s7 + $0x60] sm:$0xff] %v1103
    %1121 = vst.msk [vmem:[%s7 + $0x68] sm:$0xff] %vm1108, %v1104
    %1122 = vst [vmem:[%s7 + $0x70] sm:$0xff] %v1105
    %1123 = vst.msk [vmem:[%s7 + $0x78] sm:$0xff] %vm1108, %v1106
    // Predicated region
    $region38: #{finalgen_forward.1} parent=1 // pred_check
      _
    $region39: #{finalgen_forward.1} parent=1 // pred_check_branch
      %1125 = sbr.rel (0) target = $region41
    $region40: #{finalgen_forward.1} parent=1 // pred_region
      _
    $region41: #{finalgen_forward.1} parent=1 // pred_fallthru
      _
    // Predicated region
    $region42: #{finalgen_forward.1} parent=1 // pred_check
      _
    $region43: #{finalgen_forward.1} parent=1 // pred_check_branch
      %1127 = sbr.rel (0) target = $region45
    $region44: #{finalgen_forward.1} parent=1 // pred_region
      _
    $region45: #{finalgen_forward.1} parent=1 // pred_fallthru
      _
    %1128 = vsyncpa [#allocation3], 1
    %1129 = vsyncpa [#allocation5], 1

</llo_original>
